<compile_context>
chip_gen: v5e
topology: v5e:2x2
jax: 0.10.0
libtpu: 0.0.40
codegen_flags: <defaults>
</compile_context>

<pallas_src>
import jax
import jax.numpy as jnp
from jax.experimental import pallas as pl
from jax.experimental.pallas import tpu as pltpu

_LANE = 128
_ROW_TILE = 2048  # rows per block; multiple of 32 so f32/bf16/int8 all tile


def _make_color_kernel(total_rows, row_tile, blocks_per_core, need_mask):
    def kernel(x1_ref, x2_ref, aa_ref, bb_ref, ab_ref):
        c = pl.program_id(0)   # core-split axis ("parallel")
        i = pl.program_id(1)   # reduction axis within a core ("arbitrary")

        @pl.when(i == 0)
        def _():
            aa_ref[...] = jnp.zeros_like(aa_ref)
            bb_ref[...] = jnp.zeros_like(bb_ref)
            ab_ref[...] = jnp.zeros_like(ab_ref)

        a = x1_ref[...].astype(jnp.float32)
        b = x2_ref[...].astype(jnp.float32)

        if need_mask:
            # Mask rows past the logical end (partial last tile, or the one
            # out-of-range block whose index_map was clamped).
            logical_block = c * blocks_per_core + i
            row = (logical_block * row_tile
                   + jax.lax.broadcasted_iota(jnp.int32, a.shape, 0))
            valid = row < total_rows
            a = jnp.where(valid, a, 0.0)
            b = jnp.where(valid, b, 0.0)

        # Fold the whole block into per-lane partials and accumulate into the
        # resident (1,1,128) output blocks (one per core).
        aa_ref[...] += jnp.sum(a * a, axis=0, keepdims=True).reshape(1, 1, _LANE)
        bb_ref[...] += jnp.sum(b * b, axis=0, keepdims=True).reshape(1, 1, _LANE)
        ab_ref[...] += jnp.sum(a * b, axis=0, keepdims=True).reshape(1, 1, _LANE)

    return kernel


def color_loss_pallas(x1, x2, *, row_tile=_ROW_TILE):
    """1 - cos(x1, x2) over the flattened tensors (matches torch color_loss)."""
    assert x1.shape == x2.shape
    x1f = x1.reshape(-1)
    x2f = x2.reshape(-1)
    n = x1f.shape[0]
    if n % _LANE != 0:
        # TODO(synk): this tail pad costs one HBM copy of each input; it only
        # triggers when numel is not a multiple of 128.
        pad = _LANE - n % _LANE
        x1f = jnp.pad(x1f, (0, pad))
        x2f = jnp.pad(x2f, (0, pad))
    m = x1f.shape[0] // _LANE
    x1m = x1f.reshape(m, _LANE)
    x2m = x2f.reshape(m, _LANE)

    tm = row_tile if m >= row_tile else m       # full-dim block when small
    num_blocks = pl.cdiv(m, tm)
    per_core = pl.cdiv(num_blocks, 2)           # 2-way TensorCore split
    need_mask = (2 * per_core * tm) > m
    last_block = num_blocks - 1

    if 2 * per_core > num_blocks:
        def in_map(c, i):
            # Clamp the (at most one) out-of-range block; it is fully masked
            # inside the kernel so the duplicated data contributes nothing.
            return (jnp.minimum(c * per_core + i, last_block), 0)
    else:
        def in_map(c, i):
            return (c * per_core + i, 0)

    out_spec = pl.BlockSpec((1, 1, _LANE), lambda c, i: (c, 0, 0))
    out_shape = tuple(jax.ShapeDtypeStruct((2, 1, _LANE), jnp.float32)
                      for _ in range(3))

    kernel = _make_color_kernel(m, tm, per_core, need_mask)

    paa, pbb, pab = pl.pallas_call(
        kernel,
        out_shape=out_shape,
        grid_spec=pltpu.PrefetchScalarGridSpec(
            num_scalar_prefetch=0,
            grid=(2, per_core),
            in_specs=[pl.BlockSpec((tm, _LANE), in_map),
                      pl.BlockSpec((tm, _LANE), in_map)],
            out_specs=[out_spec, out_spec, out_spec],
        ),
        compiler_params=pltpu.CompilerParams(
            dimension_semantics=("parallel", "arbitrary")),
    )(x1m, x2m)

    saa = jnp.sum(paa)
    sbb = jnp.sum(pbb)
    sab = jnp.sum(pab)
    n1 = jnp.sqrt(saa + 1e-8)
    n2 = jnp.sqrt(sbb + 1e-8)
    return 1.0 - sab / (n1 * n2)


def _bilinear_half(x):
    """F.interpolate(x, scale_factor=0.5, mode='bilinear', align_corners=False)
    for even H, W reduces exactly to 2x2 average pooling (NCHW)."""
    # TODO(synk): only matches PyTorch bilinear for even spatial dims.
    n, c, h, w = x.shape
    return x.reshape(n, c, h // 2, 2, w // 2, 2).mean(axis=(3, 5))


@jax.jit
def _color_loss_single_jit(pred, target, weight):
    return weight * color_loss_pallas(pred, target)


@jax.jit
def _color_loss_pyramid_jit(pred0, pred1, pred2, target, weight):
    loss_1 = color_loss_pallas(pred0, target)
    target_2 = _bilinear_half(target)
    loss_2 = color_loss_pallas(pred1, target_2)
    target_3 = _bilinear_half(target_2)
    loss_3 = color_loss_pallas(pred2, target_3)
    return weight * (loss_1 + loss_2 + loss_3)


class ColorLoss:
    """JAX/Pallas port of the PyTorch ColorLoss module."""

    def __init__(self, loss_weight=1.0):
        self.loss_weight = loss_weight

    def __call__(self, pred, target, **kwargs):
        w = jnp.float32(self.loss_weight)
        if isinstance(pred, tuple):
            return _color_loss_pyramid_jit(pred[0], pred[1], pred[2], target, w)
        return _color_loss_single_jit(pred, target, w)


def _color_loss_ref(x1, x2):
    x1 = x1.astype(jnp.float32)
    x2 = x2.astype(jnp.float32)
    n1 = jnp.sqrt(jnp.sum(x1 * x1) + 1e-8)
    n2 = jnp.sqrt(jnp.sum(x2 * x2) + 1e-8)
    return 1.0 - jnp.sum(x1 * x2) / (n1 * n2)


if __name__ == "__main__":
    key = jax.random.PRNGKey(0)
    k1, k2, k3, k4 = jax.random.split(key, 4)

    N, C, H, W = 2, 4, 16, 16
    pred = jax.random.uniform(k1, (N, C, H, W), dtype=jnp.float32)
    target = jax.random.uniform(k2, (N, C, H, W), dtype=jnp.float32)

    module = ColorLoss(loss_weight=1.0)

    # single-tensor path
    loss = module(pred, target)
    loss = jax.block_until_ready(loss)
    ref = _color_loss_ref(pred, target)
    assert jnp.allclose(loss, ref, atol=1e-5, rtol=1e-5), (loss, ref)

    # tuple path (multi-scale predictions)
    pred2 = jax.random.uniform(k3, (N, C, H // 2, W // 2), dtype=jnp.float32)
    pred3 = jax.random.uniform(k4, (N, C, H // 4, W // 4), dtype=jnp.float32)
    loss_tuple = module((pred, pred2, pred3), target)
    loss_tuple = jax.block_until_ready(loss_tuple)
    t2 = _bilinear_half(target)
    t3 = _bilinear_half(t2)
    ref_tuple = (_color_loss_ref(pred, target)
                 + _color_loss_ref(pred2, t2)
                 + _color_loss_ref(pred3, t3))
    assert jnp.allclose(loss_tuple, ref_tuple, atol=1e-5, rtol=1e-5), (
        loss_tuple, ref_tuple)

    print("KERNEL_OK")
</pallas_src>

<mosaic_0001>
module attributes {stable_mosaic.version = 11 : i64} {
  func.func @kernel(%arg0: i32, %arg1: i32, %arg2: memref<16x128xf32, #tpu.memory_space<vmem>>, %arg3: memref<16x128xf32, #tpu.memory_space<vmem>>, %arg4: memref<1x1x128xf32, #tpu.memory_space<vmem>>, %arg5: memref<1x1x128xf32, #tpu.memory_space<vmem>>, %arg6: memref<1x1x128xf32, #tpu.memory_space<vmem>>) attributes {dimension_semantics = [#tpu.dimension_semantics<parallel>, #tpu.dimension_semantics<arbitrary>], iteration_bounds = array<i64: 2, 1>, scalar_prefetch = 0 : i64, scratch_operands = 0 : i64, tpu.core_type = #tpu.core_type<tc>, window_params = [{transform_indices = @transform_0, window_bounds = array<i64: 16, 128>}, {transform_indices = @transform_1, window_bounds = array<i64: 16, 128>}, {transform_indices = @transform_2, window_bounds = array<i64: 1, 1, 128>}, {transform_indices = @transform_3, window_bounds = array<i64: 1, 1, 128>}, {transform_indices = @transform_4, window_bounds = array<i64: 1, 1, 128>}]} {
    %c0_i32 = arith.constant 0 : i32
    %0 = arith.cmpi eq, %arg1, %c0_i32 : i32
    %1 = arith.extui %0 : i1 to i32
    %c0_i32_0 = arith.constant 0 : i32
    %2 = arith.cmpi ne, %1, %c0_i32_0 : i32
    scf.if %2 {
      %cst_27 = arith.constant 0.000000e+00 : f32
      %38 = vector.broadcast %cst_27 : f32 to vector<1x1x128xf32>
      %c0_28 = arith.constant 0 : index
      %c0_29 = arith.constant 0 : index
      %c0_30 = arith.constant 0 : index
      %39 = vector.load %arg4[%c0_28, %c0_29, %c0_30] : memref<1x1x128xf32, #tpu.memory_space<vmem>>, vector<1x1x128xf32>
      tpu.vector_store %arg4[%c0_28, %c0_29, %c0_30], %38 {strides = array<i32>} : memref<1x1x128xf32, #tpu.memory_space<vmem>>, vector<1x1x128xf32>,
      %cst_31 = arith.constant 0.000000e+00 : f32
      %40 = vector.broadcast %cst_31 : f32 to vector<1x1x128xf32>
      %c0_32 = arith.constant 0 : index
      %c0_33 = arith.constant 0 : index
      %c0_34 = arith.constant 0 : index
      %41 = vector.load %arg5[%c0_32, %c0_33, %c0_34] : memref<1x1x128xf32, #tpu.memory_space<vmem>>, vector<1x1x128xf32>
      tpu.vector_store %arg5[%c0_32, %c0_33, %c0_34], %40 {strides = array<i32>} : memref<1x1x128xf32, #tpu.memory_space<vmem>>, vector<1x1x128xf32>,
      %cst_35 = arith.constant 0.000000e+00 : f32
      %42 = vector.broadcast %cst_35 : f32 to vector<1x1x128xf32>
      %c0_36 = arith.constant 0 : index
      %c0_37 = arith.constant 0 : index
      %c0_38 = arith.constant 0 : index
      %43 = vector.load %arg6[%c0_36, %c0_37, %c0_38] : memref<1x1x128xf32, #tpu.memory_space<vmem>>, vector<1x1x128xf32>
      tpu.vector_store %arg6[%c0_36, %c0_37, %c0_38], %42 {strides = array<i32>} : memref<1x1x128xf32, #tpu.memory_space<vmem>>, vector<1x1x128xf32>,
    } else {
    }
    %c0 = arith.constant 0 : index
    %c0_1 = arith.constant 0 : index
    %3 = vector.load %arg2[%c0, %c0_1] : memref<16x128xf32, #tpu.memory_space<vmem>>, vector<16x128xf32>
    %c0_2 = arith.constant 0 : index
    %c0_3 = arith.constant 0 : index
    %4 = vector.load %arg3[%c0_2, %c0_3] : memref<16x128xf32, #tpu.memory_space<vmem>>, vector<16x128xf32>
    %c1_i32 = arith.constant 1 : i32
    %5 = arith.muli %arg0, %c1_i32 : i32
    %6 = arith.addi %5, %arg1 : i32
    %c16_i32 = arith.constant 16 : i32
    %7 = arith.muli %6, %c16_i32 : i32
    %8 = tpu.iota {dimensions = array<i32: 0>} : vector<16x128xi32>
    %9 = vector.broadcast %7 : i32 to vector<16x128xi32>
    %10 = arith.addi %9, %8 : vector<16x128xi32>
    %c16_i32_4 = arith.constant 16 : i32
    %11 = vector.broadcast %c16_i32_4 : i32 to vector<16x128xi32>
    %12 = arith.cmpi slt, %10, %11 : vector<16x128xi32>
    %cst = arith.constant 0.000000e+00 : f32
    %13 = vector.broadcast %cst : f32 to vector<16x128xf32>
    %14 = arith.select %12, %3, %13 : vector<16x128xi1>, vector<16x128xf32>
    %cst_5 = arith.constant 0.000000e+00 : f32
    %15 = vector.broadcast %cst_5 : f32 to vector<16x128xf32>
    %16 = arith.select %12, %4, %15 : vector<16x128xi1>, vector<16x128xf32>
    %c0_6 = arith.constant 0 : index
    %c0_7 = arith.constant 0 : index
    %c0_8 = arith.constant 0 : index
    %17 = vector.load %arg4[%c0_6, %c0_7, %c0_8] : memref<1x1x128xf32, #tpu.memory_space<vmem>>, vector<1x1x128xf32>
    %18 = arith.mulf %14, %14 : vector<16x128xf32>
    %cst_9 = arith.constant dense<0.000000e+00> : vector<128xf32>
    %19 = vector.multi_reduction <add>, %18, %cst_9 [0] : vector<16x128xf32> to vector<128xf32>
    %20 = vector.shape_cast %19 : vector<128xf32> to vector<1x128xf32>
    %21 = vector.shape_cast %20 : vector<1x128xf32> to vector<1x1x128xf32>
    %22 = arith.addf %17, %21 : vector<1x1x128xf32>
    %c0_10 = arith.constant 0 : index
    %c0_11 = arith.constant 0 : index
    %c0_12 = arith.constant 0 : index
    %23 = vector.load %arg4[%c0_10, %c0_11, %c0_12] : memref<1x1x128xf32, #tpu.memory_space<vmem>>, vector<1x1x128xf32>
    tpu.vector_store %arg4[%c0_10, %c0_11, %c0_12], %22 {strides = array<i32>} : memref<1x1x128xf32, #tpu.memory_space<vmem>>, vector<1x1x128xf32>,
    %c0_13 = arith.constant 0 : index
    %c0_14 = arith.constant 0 : index
    %c0_15 = arith.constant 0 : index
    %24 = vector.load %arg5[%c0_13, %c0_14, %c0_15] : memref<1x1x128xf32, #tpu.memory_space<vmem>>, vector<1x1x128xf32>
    %25 = arith.mulf %16, %16 : vector<16x128xf32>
    %cst_16 = arith.constant dense<0.000000e+00> : vector<128xf32>
    %26 = vector.multi_reduction <add>, %25, %cst_16 [0] : vector<16x128xf32> to vector<128xf32>
    %27 = vector.shape_cast %26 : vector<128xf32> to vector<1x128xf32>
    %28 = vector.shape_cast %27 : vector<1x128xf32> to vector<1x1x128xf32>
    %29 = arith.addf %24, %28 : vector<1x1x128xf32>
    %c0_17 = arith.constant 0 : index
    %c0_18 = arith.constant 0 : index
    %c0_19 = arith.constant 0 : index
    %30 = vector.load %arg5[%c0_17, %c0_18, %c0_19] : memref<1x1x128xf32, #tpu.memory_space<vmem>>, vector<1x1x128xf32>
    tpu.vector_store %arg5[%c0_17, %c0_18, %c0_19], %29 {strides = array<i32>} : memref<1x1x128xf32, #tpu.memory_space<vmem>>, vector<1x1x128xf32>,
    %c0_20 = arith.constant 0 : index
    %c0_21 = arith.constant 0 : index
    %c0_22 = arith.constant 0 : index
    %31 = vector.load %arg6[%c0_20, %c0_21, %c0_22] : memref<1x1x128xf32, #tpu.memory_space<vmem>>, vector<1x1x128xf32>
    %32 = arith.mulf %14, %16 : vector<16x128xf32>
    %cst_23 = arith.constant dense<0.000000e+00> : vector<128xf32>
    %33 = vector.multi_reduction <add>, %32, %cst_23 [0] : vector<16x128xf32> to vector<128xf32>
    %34 = vector.shape_cast %33 : vector<128xf32> to vector<1x128xf32>
    %35 = vector.shape_cast %34 : vector<1x128xf32> to vector<1x1x128xf32>
    %36 = arith.addf %31, %35 : vector<1x1x128xf32>
    %c0_24 = arith.constant 0 : index
    %c0_25 = arith.constant 0 : index
    %c0_26 = arith.constant 0 : index
    %37 = vector.load %arg6[%c0_24, %c0_25, %c0_26] : memref<1x1x128xf32, #tpu.memory_space<vmem>>, vector<1x1x128xf32>
    tpu.vector_store %arg6[%c0_24, %c0_25, %c0_26], %36 {strides = array<i32>} : memref<1x1x128xf32, #tpu.memory_space<vmem>>, vector<1x1x128xf32>,
    return
  }
  func.func @transform_0(%arg0: i32, %arg1: i32) -> (i32, i32) {
    %c1_i32 = arith.constant 1 : i32
    %0 = arith.muli %arg0, %c1_i32 : i32
    %1 = arith.addi %0, %arg1 : i32
    %c0_i32 = arith.constant 0 : i32
    %2 = arith.minsi %1, %c0_i32 : i32
    %c0_i32_0 = arith.constant 0 : i32
    %c0_i32_1 = arith.constant 0 : i32
    return %2, %c0_i32_0 : i32, i32
  }
  func.func @transform_1(%arg0: i32, %arg1: i32) -> (i32, i32) {
    %c1_i32 = arith.constant 1 : i32
    %0 = arith.muli %arg0, %c1_i32 : i32
    %1 = arith.addi %0, %arg1 : i32
    %c0_i32 = arith.constant 0 : i32
    %2 = arith.minsi %1, %c0_i32 : i32
    %c0_i32_0 = arith.constant 0 : i32
    %c0_i32_1 = arith.constant 0 : i32
    return %2, %c0_i32_0 : i32, i32
  }
  func.func @transform_2(%arg0: i32, %arg1: i32) -> (i32, i32, i32) {
    %c0_i32 = arith.constant 0 : i32
    %c0_i32_0 = arith.constant 0 : i32
    %c0_i32_1 = arith.constant 0 : i32
    return %arg0, %c0_i32, %c0_i32_0 : i32, i32, i32
  }
  func.func @transform_3(%arg0: i32, %arg1: i32) -> (i32, i32, i32) {
    %c0_i32 = arith.constant 0 : i32
    %c0_i32_0 = arith.constant 0 : i32
    %c0_i32_1 = arith.constant 0 : i32
    return %arg0, %c0_i32, %c0_i32_0 : i32, i32, i32
  }
  func.func @transform_4(%arg0: i32, %arg1: i32) -> (i32, i32, i32) {
    %c0_i32 = arith.constant 0 : i32
    %c0_i32_0 = arith.constant 0 : i32
    %c0_i32_1 = arith.constant 0 : i32
    return %arg0, %c0_i32, %c0_i32_0 : i32, i32, i32
  }
}

</mosaic_0001>

<llo_original>
// kernel: _color_loss_single_jit.1
$region0: #{_color_loss_single_jit.1}
  #allocation0 [shape = 'u32[]', space=smem, size = 0x4, offset = 0x4, fixed_abs, tag = 'smem constant byte address 0x4 - core index']
  #allocation1 [shape = 'u32[72,128]{1,0:T(1,128)}', space=vmem, size = 0x9000, scoped, tag = 'internal scratch']
  %s0 = inlined_call_operand.vmem [shape: f32[16,128], index: 0, kind: input, shape index: {}]
  %s1 = inlined_call_operand.vmem [shape: f32[16,128], index: 1, kind: input, shape index: {}]
  %s2 = inlined_call_operand.vmem [shape: f32[2,1,128], index: 2, kind: output, shape index: {0}]
  %s3 = inlined_call_operand.vmem [shape: f32[2,1,128], index: 3, kind: output, shape index: {1}]
  %s4 = inlined_call_operand.vmem [shape: f32[2,1,128], index: 4, kind: output, shape index: {2}]
  %5 = xla_tuple %s2, %s3, %s4
  %s6 = sld [smem:[#allocation0]]
  $region61: #{_color_loss_single_jit.1} parent=0
    _
  %s8 = ssub.s32 1, %s6
  %s9 = scalar_select 0, %s8, %s6
  loop: start=0, step=1, limit=4
  $region2: #{_color_loss_single_jit.1} parent=0 // loop_pre_header
    _
  $region3: #{_color_loss_single_jit.1} parent=0 // loop_header
    %s11 = sphi 0, %s15
    %p12 = scmp.ge.s32.totalorder %s11, 4
    %s18 = sphi 0, %s30
    %s19 = sphi 0, %s26
    %s20 = sphi 0, %s18
    %s21 = sphi 0, %s19
    %s22 = sphi 0, %s20
    %s23 = sphi 0, %s21
    %s39 = sphi 0, %s41
    %s42 = sphi 0, %s39
    %s43 = sphi 0, %s42
    %s59 = sphi 0, %s43
    %s71 = sphi 0, %s73
    %s74 = sphi 0, %s71
    %s75 = sphi 0, %s74
    %s91 = sphi 0, %s75
    %s97 = sphi 0, %s99
    %s100 = sphi 0, %s97
    %s101 = sphi 0, %s100
    %s117 = sphi 0, %s101
    %s123 = sphi 0, %s125
    %s126 = sphi 0, %s123
    %s127 = sphi 0, %s126
    %s143 = sphi 0, %s127
    %s149 = sphi 0, %s151
    %s152 = sphi 0, %s149
    %s153 = sphi 0, %s152
    %s169 = sphi 0, %s153
  $region4: #{_color_loss_single_jit.1} parent=0 // loop_header_branch
    %14 = sbr.rel (%p12) target = $region8
  $region5: #{_color_loss_single_jit.1} parent=0 // loop_body
    %s16 = ssub.s32 %s11, 1
    %s17 = ssub.s32 %s11, 2
    %s24 = sadd.s32 1, %s19
    %p25 = scmp.ge.s32.totalorder %s24, 1
    %s26 = scalar_select %p25, 0, %s24
    %s27 = sadd.s32 1, %s18
    %s28 = scalar_select %p25, %s27, %s18
    %p29 = scmp.ge.s32.totalorder %s28, 2
    %s30 = scalar_select %p29, 0, %s28
    %s31 = sadd.s32 %s18, %s19
    %p32 = scmp.lt.s32.totalorder %s31, 0
    %s33 = scalar_select %p32, %s31, 0
    %s34 = sadd.s32 %s30, %s26
    %p35 = scmp.lt.s32.totalorder %s34, 0
    %s36 = scalar_select %p35, %s34, 0
    %s37 = ssub.s32 %s33, %s36
    %p38 = scmp.eq.s32.totalorder %s37, 0
    %s40 = sadd.s32 %s39, 1
    %s41 = scalar_select %p38, %s39, %s40
    %p44 = pneg %p38
    %p45 = scmp.eq.s32.totalorder %s11, 1
    %p46 = por %p44, %p45
    %p47 = scmp.ne.s32.totalorder %s39, %s42
    %p48 = scmp.eq.s32.totalorder %s11, 0
    %p49 = por %p47, %p48
    %p50 = scmp.ne.s32.totalorder %s39, %s42
    %p51 = scmp.eq.s32.totalorder %s16, 1
    %p52 = por %p50, %p51
    %p53 = scmp.ne.s32.totalorder %s42, %s43
    %p54 = scmp.eq.s32.totalorder %s16, 0
    %p55 = por %p53, %p54
    %p56 = scmp.ne.s32.totalorder %s42, %s43
    %p57 = scmp.eq.s32.totalorder %s17, 1
    %p58 = por %p56, %p57
    %p60 = scmp.ne.s32.totalorder %s43, %s59
    %p61 = scmp.eq.s32.totalorder %s17, 0
    %p62 = por %p60, %p61
    %s63 = sadd.s32 %s18, %s19
    %p64 = scmp.lt.s32.totalorder %s63, 0
    %s65 = scalar_select %p64, %s63, 0
    %s66 = sadd.s32 %s30, %s26
    %p67 = scmp.lt.s32.totalorder %s66, 0
    %s68 = scalar_select %p67, %s66, 0
    %s69 = ssub.s32 %s65, %s68
    %p70 = scmp.eq.s32.totalorder %s69, 0
    %s72 = sadd.s32 %s71, 1
    %s73 = scalar_select %p70, %s71, %s72
    %p76 = pneg %p70
    %p77 = scmp.eq.s32.totalorder %s11, 1
    %p78 = por %p76, %p77
    %p79 = scmp.ne.s32.totalorder %s71, %s74
    %p80 = scmp.eq.s32.totalorder %s11, 0
    %p81 = por %p79, %p80
    %p82 = scmp.ne.s32.totalorder %s71, %s74
    %p83 = scmp.eq.s32.totalorder %s16, 1
    %p84 = por %p82, %p83
    %p85 = scmp.ne.s32.totalorder %s74, %s75
    %p86 = scmp.eq.s32.totalorder %s16, 0
    %p87 = por %p85, %p86
    %p88 = scmp.ne.s32.totalorder %s74, %s75
    %p89 = scmp.eq.s32.totalorder %s17, 1
    %p90 = por %p88, %p89
    %p92 = scmp.ne.s32.totalorder %s75, %s91
    %p93 = scmp.eq.s32.totalorder %s17, 0
    %p94 = por %p92, %p93
    %s95 = ssub.s32 %s18, %s30
    %p96 = scmp.eq.s32.totalorder %s95, 0
    %s98 = sadd.s32 %s97, 1
    %s99 = scalar_select %p96, %s97, %s98
    %p102 = pneg %p96
    %p103 = scmp.eq.s32.totalorder %s11, 1
    %p104 = por %p102, %p103
    %p105 = scmp.ne.s32.totalorder %s97, %s100
    %p106 = scmp.eq.s32.totalorder %s11, 0
    %p107 = por %p105, %p106
    %p108 = scmp.ne.s32.totalorder %s97, %s100
    %p109 = scmp.eq.s32.totalorder %s16, 1
    %p110 = por %p108, %p109
    %p111 = scmp.ne.s32.totalorder %s100, %s101
    %p112 = scmp.eq.s32.totalorder %s16, 0
    %p113 = por %p111, %p112
    %p114 = scmp.ne.s32.totalorder %s100, %s101
    %p115 = scmp.eq.s32.totalorder %s17, 1
    %p116 = por %p114, %p115
    %p118 = scmp.ne.s32.totalorder %s101, %s117
    %p119 = scmp.eq.s32.totalorder %s17, 0
    %p120 = por %p118, %p119
    %s121 = ssub.s32 %s18, %s30
    %p122 = scmp.eq.s32.totalorder %s121, 0
    %s124 = sadd.s32 %s123, 1
    %s125 = scalar_select %p122, %s123, %s124
    %p128 = pneg %p122
    %p129 = scmp.eq.s32.totalorder %s11, 1
    %p130 = por %p128, %p129
    %p131 = scmp.ne.s32.totalorder %s123, %s126
    %p132 = scmp.eq.s32.totalorder %s11, 0
    %p133 = por %p131, %p132
    %p134 = scmp.ne.s32.totalorder %s123, %s126
    %p135 = scmp.eq.s32.totalorder %s16, 1
    %p136 = por %p134, %p135
    %p137 = scmp.ne.s32.totalorder %s126, %s127
    %p138 = scmp.eq.s32.totalorder %s16, 0
    %p139 = por %p137, %p138
    %p140 = scmp.ne.s32.totalorder %s126, %s127
    %p141 = scmp.eq.s32.totalorder %s17, 1
    %p142 = por %p140, %p141
    %p144 = scmp.ne.s32.totalorder %s127, %s143
    %p145 = scmp.eq.s32.totalorder %s17, 0
    %p146 = por %p144, %p145
    %s147 = ssub.s32 %s18, %s30
    %p148 = scmp.eq.s32.totalorder %s147, 0
    %s150 = sadd.s32 %s149, 1
    %s151 = scalar_select %p148, %s149, %s150
    %p154 = pneg %p148
    %p155 = scmp.eq.s32.totalorder %s11, 1
    %p156 = por %p154, %p155
    %p157 = scmp.ne.s32.totalorder %s149, %s152
    %p158 = scmp.eq.s32.totalorder %s11, 0
    %p159 = por %p157, %p158
    %p160 = scmp.ne.s32.totalorder %s149, %s152
    %p161 = scmp.eq.s32.totalorder %s16, 1
    %p162 = por %p160, %p161
    %p163 = scmp.ne.s32.totalorder %s152, %s153
    %p164 = scmp.eq.s32.totalorder %s16, 0
    %p165 = por %p163, %p164
    %p166 = scmp.ne.s32.totalorder %s152, %s153
    %p167 = scmp.eq.s32.totalorder %s17, 1
    %p168 = por %p166, %p167
    %p170 = scmp.ne.s32.totalorder %s153, %s169
    %p171 = scmp.eq.s32.totalorder %s17, 0
    %p172 = por %p170, %p171
    %p173 = scmp.le.s32.totalorder 1, %s11
    %p174 = scmp.lt.s32.totalorder %s11, 3
    %p175 = pnand %p173, %p174
    %p176 = pneg %p175
    // Predicated region
    $region9: #{_color_loss_single_jit.1} parent=5 // pred_check
      _
    $region10: #{_color_loss_single_jit.1} parent=5 // pred_check_branch
      %178 = sbr.rel (%p175) target = $region12
    $region11: #{_color_loss_single_jit.1} parent=5 // pred_region
      %s179 = ssub.s32 %s11, 1
    $region12: #{_color_loss_single_jit.1} parent=5 // pred_fallthru
      _
    %p180 = scmp.lt.s32.totalorder %s11, 2
    // Predicated region
    $region13: #{_color_loss_single_jit.1} parent=5 // pred_check
      %p181 = pneg %p180
    $region14: #{_color_loss_single_jit.1} parent=5 // pred_check_branch
      %183 = sbr.rel (%p181) target = $region16
    $region15: #{_color_loss_single_jit.1} parent=5 // pred_region
      // Predicated region
      $region17: #{_color_loss_single_jit.1} parent=15 // pred_check
        %p184 = pneg %p49
      $region18: #{_color_loss_single_jit.1} parent=15 // pred_check_branch
        %186 = sbr.rel (%p184) target = $region20
      $region19: #{_color_loss_single_jit.1} parent=15 // pred_region
        %s187 = sadd.s32 %s18, %s19
        %p188 = scmp.lt.s32.totalorder %s187, 0
        %s189 = scalar_select %p188, %s187, 0
        %s190 = smul.u32 2, %s189
        %p191 = scmp.lt.s32.totalorder %s190, 1
        %s192 = scalar_select %p191, %s190, 1
        %s193 = smul.addr %s192, 8
        %s194 = scalar_lea.vmem %s0, %s193
        %s195 = sadd.s32 %s18, %s19
        %p196 = scmp.lt.s32.totalorder %s195, 0
        %s197 = scalar_select %p196, %s195, 0
        %s198 = smul.u32 2, %s197
      $region20: #{_color_loss_single_jit.1} parent=15 // pred_fallthru
        _
      // Predicated region
      $region21: #{_color_loss_single_jit.1} parent=15 // pred_check
        %p199 = pneg %p81
      $region22: #{_color_loss_single_jit.1} parent=15 // pred_check_branch
        %201 = sbr.rel (%p199) target = $region24
      $region23: #{_color_loss_single_jit.1} parent=15 // pred_region
        %s202 = sadd.s32 %s18, %s19
        %p203 = scmp.lt.s32.totalorder %s202, 0
        %s204 = scalar_select %p203, %s202, 0
        %s205 = smul.u32 2, %s204
        %p206 = scmp.lt.s32.totalorder %s205, 1
        %s207 = scalar_select %p206, %s205, 1
        %s208 = smul.addr %s207, 8
        %s209 = scalar_lea.vmem %s1, %s208
        %s210 = sadd.s32 %s18, %s19
        %p211 = scmp.lt.s32.totalorder %s210, 0
        %s212 = scalar_select %p211, %s210, 0
        %s213 = smul.u32 2, %s212
      $region24: #{_color_loss_single_jit.1} parent=15 // pred_fallthru
        _
    $region16: #{_color_loss_single_jit.1} parent=5 // pred_fallthru
      _
    %p214 = scmp.le.s32.totalorder 1, %s11
    %p215 = scmp.lt.s32.totalorder %s11, 3
    %p216 = pnand %p214, %p215
    %p217 = pneg %p216
    // Predicated region
    $region25: #{_color_loss_single_jit.1} parent=5 // pred_check
      _
    $region26: #{_color_loss_single_jit.1} parent=5 // pred_check_branch
      %219 = sbr.rel (%p216) target = $region28
    $region27: #{_color_loss_single_jit.1} parent=5 // pred_region
      %s220 = ssub.s32 %s11, 1
      %s221 = sadd.s32 %s20, %s21
      %p222 = scmp.lt.s32.totalorder %s221, 0
      %s223 = scalar_select %p222, %s221, 0
      %s224 = smul.u32 2, %s223
      %p225 = scmp.lt.s32.totalorder %s224, 1
      %s226 = scalar_select %p225, %s224, 1
      %s227 = smul.addr %s226, 8
      %s228 = scalar_lea.vmem %s0, %s227
      %p229 = pneg %p55
      %p230 = pneg %p52
      %s231 = sadd.s32 %s20, %s21
      %p232 = scmp.lt.s32.totalorder %s231, 0
      %s233 = scalar_select %p232, %s231, 0
      %s234 = smul.u32 2, %s233
      %p235 = scmp.lt.s32.totalorder %s234, 1
      %s236 = scalar_select %p235, %s234, 1
      %s237 = smul.addr %s236, 8
      %s238 = scalar_lea.vmem %s1, %s237
      %p239 = pneg %p87
      %p240 = pneg %p84
      %p241 = pneg %p113
      %p242 = pneg %p110
      %p243 = scmp.lt.s32.totalorder %s20, 1
      %s244 = scalar_select %p243, %s20, 1
      %s245 = scalar_lea.vmem %s2, %s244
      %p246 = pneg %p139
      %p247 = pneg %p136
      %p248 = scmp.lt.s32.totalorder %s20, 1
      %s249 = scalar_select %p248, %s20, 1
      %s250 = scalar_lea.vmem %s3, %s249
      %p251 = pneg %p165
      %p252 = pneg %p162
      %p253 = scmp.lt.s32.totalorder %s20, 1
      %s254 = scalar_select %p253, %s20, 1
      %s255 = scalar_lea.vmem %s4, %s254
      %s256 = sadd.s32 %s20, %s21
      %p257 = scmp.lt.s32.totalorder %s256, 0
      %s258 = scalar_select %p257, %s256, 0
      %s259 = smul.u32 2, %s258
      %p260 = scmp.lt.s32.totalorder %s259, 1
      %s261 = scalar_select %p260, %s259, 1
      %s262 = smul.addr %s261, 8
      %s263 = scalar_lea.vmem %s0, %s262
      %s264 = sadd.s32 %s20, %s21
      %p265 = scmp.lt.s32.totalorder %s264, 0
      %s266 = scalar_select %p265, %s264, 0
      %s267 = smul.u32 2, %s266
      %s268 = sadd.s32 %s20, %s21
      %p269 = scmp.lt.s32.totalorder %s268, 0
      %s270 = scalar_select %p269, %s268, 0
      %s271 = smul.u32 2, %s270
      %p272 = scmp.lt.s32.totalorder %s271, 1
      %s273 = scalar_select %p272, %s271, 1
      %s274 = smul.addr %s273, 8
      %s275 = scalar_lea.vmem %s1, %s274
      %s276 = sadd.s32 %s20, %s21
      %p277 = scmp.lt.s32.totalorder %s276, 0
      %s278 = scalar_select %p277, %s276, 0
      %s279 = smul.u32 2, %s278
      %p280 = scmp.lt.s32.totalorder %s20, 1
      %s281 = scalar_select %p280, %s20, 1
      %s282 = scalar_lea.vmem %s2, %s281
      %p283 = scmp.lt.s32.totalorder %s20, 1
      %s284 = scalar_select %p283, %s20, 1
      %s285 = scalar_lea.vmem %s3, %s284
      %p286 = scmp.lt.s32.totalorder %s20, 1
      %s287 = scalar_select %p286, %s20, 1
      %s288 = scalar_lea.vmem %s4, %s287
      %p289 = scmp.eq.s32.totalorder %s21, 0
      // Predicated region
      $region29: #{_color_loss_single_jit.1} parent=27 // pred_check
        %p290 = pneg %p289
      $region30: #{_color_loss_single_jit.1} parent=27 // pred_check_branch
        %292 = sbr.rel (%p290) target = $region32
      $region31: #{_color_loss_single_jit.1} parent=27 // pred_region
        %293 = vst [vmem:[%s282] sm:$0x1] 0.0
        %294 = vst [vmem:[%s285] sm:$0x1] 0.0
        %295 = vst [vmem:[%s288] sm:$0x1] 0.0
      $region32: #{_color_loss_single_jit.1} parent=27 // pred_fallthru
        _
      %v296 = vld [vmem:[%s263] sm:$0xff]
      %v297 = vld [vmem:[%s263 + $0x8] sm:$0xff]
      %v298 = vld [vmem:[%s275] sm:$0xff]
      %v299 = vld [vmem:[%s275 + $0x8] sm:$0xff]
      %s300 = sadd.s32 %s20, %s21
      %s301 = smul.u32 %s300, 16
      %v302 = vlaneseq
      %v303 = vshrl.u32 %v302, 7
      %v304 = vadd.s32 %v303, 8
      %v305 = vstv %s301
      %v306 = vadd.s32 %v305, %v303
      %v307 = vadd.s32 %v305, %v304
      %vm308 = vcmp.lt.s32.totalorder %v306, 16
      %vm309 = vcmp.lt.s32.totalorder %v307, 16
      %v310 = vsel %vm308, %v296, 0.0
      %v311 = vsel %vm309, %v297, 0.0
      %v312 = vsel %vm308, %v298, 0.0
      %v313 = vsel %vm309, %v299, 0.0
      %v314 = vld [vmem:[%s282] sm:$0x1]
      %v315 = vmul.f32 %v310, %v310
      %v316 = vmul.f32 %v311, %v311
      %v317 = vadd.f32 %v315, %v316
      %v318 = vrot.slane %v317, 4
      %v319 = vadd.f32 %v317, %v318
      %v320 = vrot.slane %v319, 2
      %v321 = vadd.f32 %v319, %v320
      %v322 = vrot.slane %v321, 1
      %v323 = vadd.f32 %v321, %v322
      %v324 = vadd.f32 %v314, %v323
      %325 = vst [vmem:[%s282] sm:$0x1] %v324
      %v326 = vld [vmem:[%s285] sm:$0x1]
      %v327 = vmul.f32 %v312, %v312
      %v328 = vmul.f32 %v313, %v313
      %v329 = vadd.f32 %v327, %v328
      %v330 = vrot.slane %v329, 4
      %v331 = vadd.f32 %v329, %v330
      %v332 = vrot.slane %v331, 2
      %v333 = vadd.f32 %v331, %v332
      %v334 = vrot.slane %v333, 1
      %v335 = vadd.f32 %v333, %v334
      %v336 = vadd.f32 %v326, %v335
      %337 = vst [vmem:[%s285] sm:$0x1] %v336
      %v338 = vld [vmem:[%s288] sm:$0x1]
      %v339 = vmul.f32 %v310, %v312
      %v340 = vmul.f32 %v311, %v313
      %v341 = vadd.f32 %v339, %v340
      %v342 = vrot.slane %v341, 4
      %v343 = vadd.f32 %v341, %v342
      %v344 = vrot.slane %v343, 2
      %v345 = vadd.f32 %v343, %v344
      %v346 = vrot.slane %v345, 1
      %v347 = vadd.f32 %v345, %v346
      %v348 = vadd.f32 %v338, %v347
      %349 = vst [vmem:[%s288] sm:$0x1] %v348
      %p350 = scmp.lt.s32.totalorder %s20, 1
      %s351 = scalar_select %p350, %s20, 1
      %s352 = scalar_lea.vmem %s2, %s351
      %p353 = scmp.lt.s32.totalorder %s20, 1
      %s354 = scalar_select %p353, %s20, 1
      %s355 = scalar_lea.vmem %s3, %s354
      %p356 = scmp.lt.s32.totalorder %s20, 1
      %s357 = scalar_select %p356, %s20, 1
      %s358 = scalar_lea.vmem %s4, %s357
      // Predicated region
      $region33: #{_color_loss_single_jit.1} parent=27 // pred_check
        %p359 = pneg %p110
      $region34: #{_color_loss_single_jit.1} parent=27 // pred_check_branch
        %361 = sbr.rel (%p359) target = $region36
      $region35: #{_color_loss_single_jit.1} parent=27 // pred_region
        _
      $region36: #{_color_loss_single_jit.1} parent=27 // pred_fallthru
        _
      // Predicated region
      $region37: #{_color_loss_single_jit.1} parent=27 // pred_check
        %p362 = pneg %p136
      $region38: #{_color_loss_single_jit.1} parent=27 // pred_check_branch
        %364 = sbr.rel (%p362) target = $region40
      $region39: #{_color_loss_single_jit.1} parent=27 // pred_region
        _
      $region40: #{_color_loss_single_jit.1} parent=27 // pred_fallthru
        _
      // Predicated region
      $region41: #{_color_loss_single_jit.1} parent=27 // pred_check
        %p365 = pneg %p162
      $region42: #{_color_loss_single_jit.1} parent=27 // pred_check_branch
        %367 = sbr.rel (%p365) target = $region44
      $region43: #{_color_loss_single_jit.1} parent=27 // pred_region
        _
      $region44: #{_color_loss_single_jit.1} parent=27 // pred_fallthru
        _
    $region28: #{_color_loss_single_jit.1} parent=5 // pred_fallthru
      _
    %p368 = scmp.le.s32.totalorder 2, %s11
    // Predicated region
    $region45: #{_color_loss_single_jit.1} parent=5 // pred_check
      %p369 = pneg %p368
    $region46: #{_color_loss_single_jit.1} parent=5 // pred_check_branch
      %371 = sbr.rel (%p369) target = $region48
    $region47: #{_color_loss_single_jit.1} parent=5 // pred_region
      %s372 = ssub.s32 %s11, 2
      // Predicated region
      $region49: #{_color_loss_single_jit.1} parent=47 // pred_check
        %p373 = pneg %p116
      $region50: #{_color_loss_single_jit.1} parent=47 // pred_check_branch
        %375 = sbr.rel (%p373) target = $region52
      $region51: #{_color_loss_single_jit.1} parent=47 // pred_region
        %p376 = scmp.lt.s32.totalorder %s22, 1
        %s377 = scalar_select %p376, %s22, 1
        %s378 = scalar_lea.vmem %s2, %s377
      $region52: #{_color_loss_single_jit.1} parent=47 // pred_fallthru
        _
      // Predicated region
      $region53: #{_color_loss_single_jit.1} parent=47 // pred_check
        %p379 = pneg %p142
      $region54: #{_color_loss_single_jit.1} parent=47 // pred_check_branch
        %381 = sbr.rel (%p379) target = $region56
      $region55: #{_color_loss_single_jit.1} parent=47 // pred_region
        %p382 = scmp.lt.s32.totalorder %s22, 1
        %s383 = scalar_select %p382, %s22, 1
        %s384 = scalar_lea.vmem %s3, %s383
      $region56: #{_color_loss_single_jit.1} parent=47 // pred_fallthru
        _
      // Predicated region
      $region57: #{_color_loss_single_jit.1} parent=47 // pred_check
        %p385 = pneg %p168
      $region58: #{_color_loss_single_jit.1} parent=47 // pred_check_branch
        %387 = sbr.rel (%p385) target = $region60
      $region59: #{_color_loss_single_jit.1} parent=47 // pred_region
        %p388 = scmp.lt.s32.totalorder %s22, 1
        %s389 = scalar_select %p388, %s22, 1
        %s390 = scalar_lea.vmem %s4, %s389
      $region60: #{_color_loss_single_jit.1} parent=47 // pred_fallthru
        _
    $region48: #{_color_loss_single_jit.1} parent=5 // pred_fallthru
      _
  $region6: #{_color_loss_single_jit.1} parent=0 // loop_footer
    %s15 = sadd.s32 1, %s11
  $region7: #{_color_loss_single_jit.1} parent=0 // loop_footer_branch
    %10 = sbr.rel target = $region3
  $region8: #{_color_loss_single_jit.1} parent=0 // loop_exit
    _

</llo_original>
